<compile_context>
chip_gen: v5e
topology: v5e:2x2
jax: 0.10.0
libtpu: 0.0.40
codegen_flags: <defaults>
</compile_context>

<pallas_src>
import functools

import jax
import jax.numpy as jnp
from jax.experimental import pallas as pl
from jax.experimental.pallas import tpu as pltpu

_LANES = 128
_SUBLANES = 8


def _round_up(n: int, m: int) -> int:
    return (n + m - 1) // m * m


def _pad_feature(d: int) -> int:
    # v6e/v7x MXUs are 256x256: pad feature dims >= 256 to multiples of 256
    # so the N dimension is fully occupied; smaller dims stay at 128 lanes
    # (native on v5e; latency/memory-bound anyway at these sizes).
    return _round_up(d, 256) if d >= 256 else _round_up(d, _LANES)


def _pad_to(a, shape):
    pads = [(0, t - s) for s, t in zip(a.shape, shape)]
    if all(p == (0, 0) for p in pads):
        return a
    return jnp.pad(a, pads)


# ----------------------------- Pallas kernel ------------------------------- #
def _resnet_kernel(x_ref,                            # (tile_b, d_in)   f32
                   w0_ref, b0_ref,                   # (d_in, dM) bf16 / f32
                   w1_ref, b1_ref,                   # (nb, dM, dH) bf16 / f32
                   w2_ref, b2_ref,                   # (nb, dH, dM) bf16 / f32
                   hs_ref, hb_ref,                   # (1, dM) f32 head BN
                   wh_ref, bh_ref,                   # (dM, dO) bf16 / f32
                   out_ref):                         # (tile_b, dO) bf16
    bf16, f32 = jnp.bfloat16, jnp.float32

    # first_layer: Linear(d_in, d_main).  x arrives f32 with its real d_in;
    # cast to bf16 just before the MXU, accumulate in f32.
    h = jnp.dot(x_ref[...].astype(bf16), w0_ref[...],
                preferred_element_type=f32) + b0_ref[...]

    def block(h, w1, b1, w2, b2):
        # Eval-mode BatchNorm1d was pre-folded into (w1, b1) in prepare_params.
        z = jnp.dot(h.astype(bf16), w1, preferred_element_type=f32) + b1
        z = jnp.maximum(z, 0.0)          # ReLU; Dropout (eval) = identity
        z = jnp.dot(z.astype(bf16), w2, preferred_element_type=f32) + b2
        return h + z                     # Dropout (eval) = identity; skip add

    n_blocks = w1_ref.shape[0]
    if n_blocks <= 4:
        # Small block counts: static unroll (best scheduler visibility).
        for i in range(n_blocks):
            h = block(h, w1_ref[i], b1_ref[i], w2_ref[i], b2_ref[i])
    else:
        # Large block counts: fori_loop with dynamic weight indexing keeps
        # code size and vreg/VMEM live ranges flat.
        h = jax.lax.fori_loop(
            0, n_blocks,
            lambda i, h: block(h, w1_ref[i], b1_ref[i], w2_ref[i], b2_ref[i]),
            h)

    # Head: BatchNorm1d (eval scale/shift) -> ReLU -> Linear(d_main, d_out).
    y = jnp.maximum(h * hs_ref[...] + hb_ref[...], 0.0)
    out_ref[...] = (jnp.dot(y.astype(bf16), wh_ref[...],
                            preferred_element_type=f32)
                    + bh_ref[...]).astype(out_ref.dtype)


# ----------------------- one-time parameter preparation --------------------- #
def prepare_params(params):
    """One-time prep (call once, outside the forward path):
      * fold eval-mode per-block BatchNorm into each block's first Linear,
      * zero-pad feature dims (d_main/d_hidden/d_out) to lane-dense widths,
      * pre-cast all matmul operands to bfloat16 (biases / BN stay f32).
    d_in is intentionally left unpadded (K < 128 costs nothing on the MXU and
    padding x would only inflate HBM traffic)."""
    (w0, b0, bn_scale, bn_shift, w1, b1, w2, b2,
     head_scale, head_shift, wh, bh) = params
    f32, bf16 = jnp.float32, jnp.bfloat16
    n_blocks, _, d_main = bn_scale.shape
    d_in = w0.shape[0]
    d_hidden = w1.shape[2]
    d_out = wh.shape[1]

    # z = (h*scale + shift) @ w1 + b1
    #   == h @ (diag(scale) @ w1) + (shift @ w1 + b1)
    w1f = bn_scale.reshape(n_blocks, d_main, 1) * w1
    b1f = b1 + jnp.matmul(bn_shift, w1)

    d_main_p = _pad_feature(d_main)
    d_hidden_p = _pad_feature(d_hidden)
    d_out_p = _pad_feature(d_out)

    weights = (
        _pad_to(w0, (d_in, d_main_p)).astype(bf16),
        _pad_to(b0, (1, d_main_p)).astype(f32),
        _pad_to(w1f, (n_blocks, d_main_p, d_hidden_p)).astype(bf16),
        _pad_to(b1f, (n_blocks, 1, d_hidden_p)).astype(f32),
        _pad_to(w2, (n_blocks, d_hidden_p, d_main_p)).astype(bf16),
        _pad_to(b2, (n_blocks, 1, d_main_p)).astype(f32),
        _pad_to(head_scale, (1, d_main_p)).astype(f32),
        _pad_to(head_shift, (1, d_main_p)).astype(f32),
        _pad_to(wh, (d_main_p, d_out_p)).astype(bf16),
        _pad_to(bh, (1, d_out_p)).astype(f32),
    )
    return weights


# ------------------------------- helpers ------------------------------------ #
def _vmem_limit_bytes() -> int:
    # Per-generation VMEM budget with headroom under physical capacity:
    # v7x 64 MiB -> ~48 MiB; v5e/v6e 128 MiB -> ~96 MiB.
    try:
        cap = pltpu.get_tpu_info().vmem_capacity_bytes
    except Exception:
        cap = 64 * 1024 * 1024  # conservative fallback
    return int(min(cap * 3 // 4, 100 * 1024 * 1024))


def _choose_tile_b(batch: int, requested: int, min_steps: int = 4) -> int:
    """Largest batch tile <= requested that keeps >= min_steps grid steps
    (>= 2 steps per TensorCore on v7x so activation DMAs overlap compute),
    with rows a multiple of 8 sublanes."""
    tile = max(_SUBLANES, min(_round_up(requested, _SUBLANES),
                              _round_up(batch, _SUBLANES)))
    while tile > _SUBLANES and (batch + tile - 1) // tile < min_steps:
        tile = max(_SUBLANES, _round_up(tile // 2, _SUBLANES))
    return tile


# ------------------------------- wrapper ------------------------------------ #
def resnet_forward(x, weights, *, d_out=None, tile_b=1024,
                   out_dtype=jnp.bfloat16):
    """Fused tabular-ResNet forward (eval mode) in one pallas_call, gridded
    over the batch.  `weights` must come from prepare_params()."""
    (w0, b0, w1, b1, w2, b2, hs, hb, wh, bh) = weights
    batch, d_in = x.shape
    assert d_in == w0.shape[0], "x feature dim must match first-layer weight"
    d_out_p = wh.shape[1]
    if d_out is None:
        d_out = d_out_p

    x = x.astype(jnp.float32)            # module does x.float(); no-op if f32
    tile_b = _choose_tile_b(batch, tile_b)
    batch_p = _round_up(batch, tile_b)
    if batch_p != batch:                  # pad batch rows only when needed
        x = jnp.pad(x, ((0, batch_p - batch), (0, 0)))

    def resident(a):
        # Whole array as one block with a constant block index: fetched into
        # VMEM once, stays resident across the batch grid.
        # TODO(synk): once weights outgrow a few MiB, single-buffer these
        # resident inputs (pipeline_mode=pl.Buffered(1)) and/or stream the
        # per-block weights over a second grid axis to fit v7x's 64 MiB VMEM.
        zeros = (0,) * a.ndim
        return pl.BlockSpec(a.shape, lambda i, _z=zeros: _z)

    in_specs = ([pl.BlockSpec((tile_b, d_in), lambda i: (i, 0))]  # x unpadded
                + [resident(a) for a in weights])
    out_spec = pl.BlockSpec((tile_b, d_out_p), lambda i: (i, 0))

    out_p = pl.pallas_call(
        _resnet_kernel,
        grid=(batch_p // tile_b,),
        in_specs=in_specs,
        out_specs=out_spec,
        out_shape=jax.ShapeDtypeStruct((batch_p, d_out_p), out_dtype),
        compiler_params=pltpu.CompilerParams(
            dimension_semantics=("parallel",),   # independent batch tiles
            vmem_limit_bytes=_vmem_limit_bytes(),
        ),
    )(x, *weights)

    # TODO(synk): callers able to consume the padded (batch_p, d_out_p) slab
    # directly should skip this slice (extra pass over the padded output).
    return out_p[:batch, :d_out]


# --------------------------- parameter creation ----------------------------- #
def make_params(key, *, d_in, n_blocks, d_main, d_hidden, d_out):
    ks = jax.random.split(key, 16)
    f32 = jnp.float32

    def lin(k, fan_in, shape):
        bound = 1.0 / jnp.sqrt(fan_in)
        return jax.random.uniform(k, shape, f32, -bound, bound)

    # first layer
    w0 = lin(ks[0], d_in, (d_in, d_main))
    b0 = lin(ks[1], d_in, (1, d_main))

    # blocks: BatchNorm1d (eval) represented as scale/shift
    eps = 1e-5
    gamma = 1.0 + 0.01 * jax.random.normal(ks[2], (n_blocks, 1, d_main), f32)
    beta = 0.01 * jax.random.normal(ks[3], (n_blocks, 1, d_main), f32)
    run_mean = 0.1 * jax.random.normal(ks[4], (n_blocks, 1, d_main), f32)
    run_var = 1.0 + 0.1 * jax.random.uniform(ks[5], (n_blocks, 1, d_main), f32)
    bn_scale = gamma / jnp.sqrt(run_var + eps)
    bn_shift = beta - run_mean * bn_scale

    w1 = lin(ks[6], d_main, (n_blocks, d_main, d_hidden))
    b1 = lin(ks[7], d_main, (n_blocks, 1, d_hidden))
    w2 = lin(ks[8], d_hidden, (n_blocks, d_hidden, d_main))
    b2 = lin(ks[9], d_hidden, (n_blocks, 1, d_main))

    # head BN (eval)
    hg = 1.0 + 0.01 * jax.random.normal(ks[10], (1, d_main), f32)
    hb = 0.01 * jax.random.normal(ks[11], (1, d_main), f32)
    hm = 0.1 * jax.random.normal(ks[12], (1, d_main), f32)
    hv = 1.0 + 0.1 * jax.random.uniform(ks[13], (1, d_main), f32)
    head_scale = hg / jnp.sqrt(hv + eps)
    head_shift = hb - hm * head_scale

    wh = lin(ks[14], d_main, (d_main, d_out))
    bh = lin(ks[15], d_main, (1, d_out))

    return (w0, b0, bn_scale, bn_shift, w1, b1, w2, b2,
            head_scale, head_shift, wh, bh)


# ------------------------ pure-JAX references (check) ------------------------ #
def resnet_reference(x, params):
    """Original module semantics (eval mode), all float32."""
    (w0, b0, bn_scale, bn_shift, w1, b1, w2, b2,
     head_scale, head_shift, wh, bh) = params
    h = x @ w0 + b0
    for i in range(w1.shape[0]):
        z = h * bn_scale[i] + bn_shift[i]
        z = jnp.maximum(z @ w1[i] + b1[i], 0.0)
        z = z @ w2[i] + b2[i]
        h = h + z
    y = jnp.maximum(h * head_scale + head_shift, 0.0)
    return y @ wh + bh


def resnet_reference_kernel_math(x, params):
    """Mirrors the kernel math (folded BN in f32, bf16 matmul operands, f32
    accumulation); output kept in f32 here."""
    (w0, b0, bn_scale, bn_shift, w1, b1, w2, b2,
     head_scale, head_shift, wh, bh) = params
    bf16, f32 = jnp.bfloat16, jnp.float32
    n_blocks, _, d_main = bn_scale.shape
    w1f = bn_scale.reshape(n_blocks, d_main, 1) * w1
    b1f = b1 + jnp.matmul(bn_shift, w1)

    h = jnp.dot(x.astype(bf16), w0.astype(bf16), preferred_element_type=f32) + b0
    for i in range(n_blocks):
        z = jnp.dot(h.astype(bf16), w1f[i].astype(bf16),
                    preferred_element_type=f32) + b1f[i]
        z = jnp.maximum(z, 0.0)
        z = jnp.dot(z.astype(bf16), w2[i].astype(bf16),
                    preferred_element_type=f32) + b2[i]
        h = h + z
    y = jnp.maximum(h * head_scale + head_shift, 0.0)
    return jnp.dot(y.astype(bf16), wh.astype(bf16),
                   preferred_element_type=f32) + bh


# ---------------------------------- main ------------------------------------ #
if __name__ == "__main__":
    # Small tabular-ResNet shapes.  batch=256 with the batch-aware tile chooser
    # gives tile_b=64 -> 4 grid steps, so the activation pipeline (and >=2
    # steps/core on v7x) is actually exercised.
    batch, d_in, d_main, d_hidden, n_blocks, d_out = 256, 16, 32, 64, 2, 4

    key = jax.random.PRNGKey(0)
    kx, kp = jax.random.split(key)
    x = jax.random.normal(kx, (batch, d_in), jnp.float32)
    params = make_params(kp, d_in=d_in, n_blocks=n_blocks, d_main=d_main,
                         d_hidden=d_hidden, d_out=d_out)

    # One-time prep: fold BN, pad feature dims, cast weights to bf16 — done
    # once, off the per-call critical path.
    weights = jax.block_until_ready(prepare_params(params))

    fwd = jax.jit(functools.partial(resnet_forward, d_out=d_out))
    out = jax.block_until_ready(fwd(x, weights))

    assert out.shape == (batch, d_out)
    assert out.dtype == jnp.bfloat16
    out_f32 = out.astype(jnp.float32)

    ref_exact = resnet_reference_kernel_math(x, params)
    ref_f32 = resnet_reference(x, params)

    assert bool(jnp.all(jnp.isfinite(out_f32)))
    # Check vs. a reference mirroring the kernel math (slack covers the bf16
    # output rounding).
    assert jnp.allclose(out_f32, ref_exact, atol=2e-2, rtol=2e-2)
    # Loose check vs. the original full-f32 module semantics (bf16 matmul
    # operands + bf16 output).
    assert jnp.allclose(out_f32, ref_f32, atol=6e-2, rtol=6e-2)
    print("KERNEL_OK")
</pallas_src>

<mosaic_0001>
module attributes {stable_mosaic.version = 11 : i64} {
  func.func @_resnet_kernel(%arg0: i32, %arg1: memref<64x16xf32, #tpu.memory_space<vmem>>, %arg2: memref<16x128xbf16, #tpu.memory_space<vmem>>, %arg3: memref<1x128xf32, #tpu.memory_space<vmem>>, %arg4: memref<2x128x128xbf16, #tpu.memory_space<vmem>>, %arg5: memref<2x1x128xf32, #tpu.memory_space<vmem>>, %arg6: memref<2x128x128xbf16, #tpu.memory_space<vmem>>, %arg7: memref<2x1x128xf32, #tpu.memory_space<vmem>>, %arg8: memref<1x128xf32, #tpu.memory_space<vmem>>, %arg9: memref<1x128xf32, #tpu.memory_space<vmem>>, %arg10: memref<128x128xbf16, #tpu.memory_space<vmem>>, %arg11: memref<1x128xf32, #tpu.memory_space<vmem>>, %arg12: memref<64x128xbf16, #tpu.memory_space<vmem>>) attributes {dimension_semantics = [#tpu.dimension_semantics<parallel>], iteration_bounds = array<i64: 4>, scalar_prefetch = 0 : i64, scratch_operands = 0 : i64, tpu.core_type = #tpu.core_type<tc>, window_params = [{transform_indices = @transform_0, window_bounds = array<i64: 64, 16>}, {pipeline_mode = #tpu.pipeline_mode<synchronous>, transform_indices = @transform_1, window_bounds = array<i64: 16, 128>}, {pipeline_mode = #tpu.pipeline_mode<synchronous>, transform_indices = @transform_2, window_bounds = array<i64: 1, 128>}, {pipeline_mode = #tpu.pipeline_mode<synchronous>, transform_indices = @transform_3, window_bounds = array<i64: 2, 128, 128>}, {pipeline_mode = #tpu.pipeline_mode<synchronous>, transform_indices = @transform_4, window_bounds = array<i64: 2, 1, 128>}, {pipeline_mode = #tpu.pipeline_mode<synchronous>, transform_indices = @transform_5, window_bounds = array<i64: 2, 128, 128>}, {pipeline_mode = #tpu.pipeline_mode<synchronous>, transform_indices = @transform_6, window_bounds = array<i64: 2, 1, 128>}, {pipeline_mode = #tpu.pipeline_mode<synchronous>, transform_indices = @transform_7, window_bounds = array<i64: 1, 128>}, {pipeline_mode = #tpu.pipeline_mode<synchronous>, transform_indices = @transform_8, window_bounds = array<i64: 1, 128>}, {pipeline_mode = #tpu.pipeline_mode<synchronous>, transform_indices = @transform_9, window_bounds = array<i64: 128, 128>}, {pipeline_mode = #tpu.pipeline_mode<synchronous>, transform_indices = @transform_10, window_bounds = array<i64: 1, 128>}, {transform_indices = @transform_11, window_bounds = array<i64: 64, 128>}]} {
    %c0 = arith.constant 0 : index
    %c0_0 = arith.constant 0 : index
    %0 = vector.load %arg1[%c0, %c0_0] : memref<64x16xf32, #tpu.memory_space<vmem>>, vector<64x16xf32>
    %1 = arith.truncf %0 : vector<64x16xf32> to vector<64x16xbf16>
    %c0_1 = arith.constant 0 : index
    %c0_2 = arith.constant 0 : index
    %2 = vector.load %arg2[%c0_1, %c0_2] : memref<16x128xbf16, #tpu.memory_space<vmem>>, vector<16x128xbf16>
    %cst = arith.constant dense<0.000000e+00> : vector<64x128xf32>
    %3 = tpu.matmul %1, %2, %cst {dimension_numbers = #tpu.dot_dimension_numbers<[1], [0], [0], [1], [0, 0, 1, 1], [], []>} : vector<64x16xbf16>, vector<16x128xbf16>, vector<64x128xf32> -> vector<64x128xf32>
    %c0_3 = arith.constant 0 : index
    %c0_4 = arith.constant 0 : index
    %4 = vector.load %arg3[%c0_3, %c0_4] : memref<1x128xf32, #tpu.memory_space<vmem>>, vector<1x128xf32>
    %5 = vector.broadcast %4 : vector<1x128xf32> to vector<64x128xf32>
    %6 = arith.addf %3, %5 : vector<64x128xf32>
    %c0_5 = arith.constant 0 : index
    %c0_6 = arith.constant 0 : index
    %c0_7 = arith.constant 0 : index
    %7 = vector.load %arg4[%c0_5, %c0_6, %c0_7] : memref<2x128x128xbf16, #tpu.memory_space<vmem>>, vector<1x128x128xbf16>
    %8 = vector.shape_cast %7 : vector<1x128x128xbf16> to vector<128x128xbf16>
    %c0_8 = arith.constant 0 : index
    %c0_9 = arith.constant 0 : index
    %c0_10 = arith.constant 0 : index
    %9 = vector.load %arg5[%c0_8, %c0_9, %c0_10] : memref<2x1x128xf32, #tpu.memory_space<vmem>>, vector<1x1x128xf32>
    %10 = vector.shape_cast %9 : vector<1x1x128xf32> to vector<1x128xf32>
    %c0_11 = arith.constant 0 : index
    %c0_12 = arith.constant 0 : index
    %c0_13 = arith.constant 0 : index
    %11 = vector.load %arg6[%c0_11, %c0_12, %c0_13] : memref<2x128x128xbf16, #tpu.memory_space<vmem>>, vector<1x128x128xbf16>
    %12 = vector.shape_cast %11 : vector<1x128x128xbf16> to vector<128x128xbf16>
    %c0_14 = arith.constant 0 : index
    %c0_15 = arith.constant 0 : index
    %c0_16 = arith.constant 0 : index
    %13 = vector.load %arg7[%c0_14, %c0_15, %c0_16] : memref<2x1x128xf32, #tpu.memory_space<vmem>>, vector<1x1x128xf32>
    %14 = vector.shape_cast %13 : vector<1x1x128xf32> to vector<1x128xf32>
    %15 = arith.truncf %6 : vector<64x128xf32> to vector<64x128xbf16>
    %cst_17 = arith.constant dense<0.000000e+00> : vector<64x128xf32>
    %16 = tpu.matmul %15, %8, %cst_17 {dimension_numbers = #tpu.dot_dimension_numbers<[1], [0], [0], [1], [0, 0, 1, 1], [], []>} : vector<64x128xbf16>, vector<128x128xbf16>, vector<64x128xf32> -> vector<64x128xf32>
    %17 = vector.broadcast %10 : vector<1x128xf32> to vector<64x128xf32>
    %18 = arith.addf %16, %17 : vector<64x128xf32>
    %cst_18 = arith.constant 0.000000e+00 : f32
    %19 = vector.broadcast %cst_18 : f32 to vector<64x128xf32>
    %20 = arith.maximumf %18, %19 : vector<64x128xf32>
    %21 = arith.truncf %20 : vector<64x128xf32> to vector<64x128xbf16>
    %cst_19 = arith.constant dense<0.000000e+00> : vector<64x128xf32>
    %22 = tpu.matmul %21, %12, %cst_19 {dimension_numbers = #tpu.dot_dimension_numbers<[1], [0], [0], [1], [0, 0, 1, 1], [], []>} : vector<64x128xbf16>, vector<128x128xbf16>, vector<64x128xf32> -> vector<64x128xf32>
    %23 = vector.broadcast %14 : vector<1x128xf32> to vector<64x128xf32>
    %24 = arith.addf %22, %23 : vector<64x128xf32>
    %25 = arith.addf %6, %24 : vector<64x128xf32>
    %c1 = arith.constant 1 : index
    %c0_20 = arith.constant 0 : index
    %c0_21 = arith.constant 0 : index
    %26 = vector.load %arg4[%c1, %c0_20, %c0_21] : memref<2x128x128xbf16, #tpu.memory_space<vmem>>, vector<1x128x128xbf16>
    %27 = vector.shape_cast %26 : vector<1x128x128xbf16> to vector<128x128xbf16>
    %c1_22 = arith.constant 1 : index
    %c0_23 = arith.constant 0 : index
    %c0_24 = arith.constant 0 : index
    %28 = vector.load %arg5[%c1_22, %c0_23, %c0_24] : memref<2x1x128xf32, #tpu.memory_space<vmem>>, vector<1x1x128xf32>
    %29 = vector.shape_cast %28 : vector<1x1x128xf32> to vector<1x128xf32>
    %c1_25 = arith.constant 1 : index
    %c0_26 = arith.constant 0 : index
    %c0_27 = arith.constant 0 : index
    %30 = vector.load %arg6[%c1_25, %c0_26, %c0_27] : memref<2x128x128xbf16, #tpu.memory_space<vmem>>, vector<1x128x128xbf16>
    %31 = vector.shape_cast %30 : vector<1x128x128xbf16> to vector<128x128xbf16>
    %c1_28 = arith.constant 1 : index
    %c0_29 = arith.constant 0 : index
    %c0_30 = arith.constant 0 : index
    %32 = vector.load %arg7[%c1_28, %c0_29, %c0_30] : memref<2x1x128xf32, #tpu.memory_space<vmem>>, vector<1x1x128xf32>
    %33 = vector.shape_cast %32 : vector<1x1x128xf32> to vector<1x128xf32>
    %34 = arith.truncf %25 : vector<64x128xf32> to vector<64x128xbf16>
    %cst_31 = arith.constant dense<0.000000e+00> : vector<64x128xf32>
    %35 = tpu.matmul %34, %27, %cst_31 {dimension_numbers = #tpu.dot_dimension_numbers<[1], [0], [0], [1], [0, 0, 1, 1], [], []>} : vector<64x128xbf16>, vector<128x128xbf16>, vector<64x128xf32> -> vector<64x128xf32>
    %36 = vector.broadcast %29 : vector<1x128xf32> to vector<64x128xf32>
    %37 = arith.addf %35, %36 : vector<64x128xf32>
    %cst_32 = arith.constant 0.000000e+00 : f32
    %38 = vector.broadcast %cst_32 : f32 to vector<64x128xf32>
    %39 = arith.maximumf %37, %38 : vector<64x128xf32>
    %40 = arith.truncf %39 : vector<64x128xf32> to vector<64x128xbf16>
    %cst_33 = arith.constant dense<0.000000e+00> : vector<64x128xf32>
    %41 = tpu.matmul %40, %31, %cst_33 {dimension_numbers = #tpu.dot_dimension_numbers<[1], [0], [0], [1], [0, 0, 1, 1], [], []>} : vector<64x128xbf16>, vector<128x128xbf16>, vector<64x128xf32> -> vector<64x128xf32>
    %42 = vector.broadcast %33 : vector<1x128xf32> to vector<64x128xf32>
    %43 = arith.addf %41, %42 : vector<64x128xf32>
    %44 = arith.addf %25, %43 : vector<64x128xf32>
    %c0_34 = arith.constant 0 : index
    %c0_35 = arith.constant 0 : index
    %45 = vector.load %arg8[%c0_34, %c0_35] : memref<1x128xf32, #tpu.memory_space<vmem>>, vector<1x128xf32>
    %46 = vector.broadcast %45 : vector<1x128xf32> to vector<64x128xf32>
    %47 = arith.mulf %44, %46 : vector<64x128xf32>
    %c0_36 = arith.constant 0 : index
    %c0_37 = arith.constant 0 : index
    %48 = vector.load %arg9[%c0_36, %c0_37] : memref<1x128xf32, #tpu.memory_space<vmem>>, vector<1x128xf32>
    %49 = vector.broadcast %48 : vector<1x128xf32> to vector<64x128xf32>
    %50 = arith.addf %47, %49 : vector<64x128xf32>
    %cst_38 = arith.constant 0.000000e+00 : f32
    %51 = vector.broadcast %cst_38 : f32 to vector<64x128xf32>
    %52 = arith.maximumf %50, %51 : vector<64x128xf32>
    %53 = arith.truncf %52 : vector<64x128xf32> to vector<64x128xbf16>
    %c0_39 = arith.constant 0 : index
    %c0_40 = arith.constant 0 : index
    %54 = vector.load %arg10[%c0_39, %c0_40] : memref<128x128xbf16, #tpu.memory_space<vmem>>, vector<128x128xbf16>
    %cst_41 = arith.constant dense<0.000000e+00> : vector<64x128xf32>
    %55 = tpu.matmul %53, %54, %cst_41 {dimension_numbers = #tpu.dot_dimension_numbers<[1], [0], [0], [1], [0, 0, 1, 1], [], []>} : vector<64x128xbf16>, vector<128x128xbf16>, vector<64x128xf32> -> vector<64x128xf32>
    %c0_42 = arith.constant 0 : index
    %c0_43 = arith.constant 0 : index
    %56 = vector.load %arg11[%c0_42, %c0_43] : memref<1x128xf32, #tpu.memory_space<vmem>>, vector<1x128xf32>
    %57 = vector.broadcast %56 : vector<1x128xf32> to vector<64x128xf32>
    %58 = arith.addf %55, %57 : vector<64x128xf32>
    %59 = arith.truncf %58 : vector<64x128xf32> to vector<64x128xbf16>
    %c0_44 = arith.constant 0 : index
    %c0_45 = arith.constant 0 : index
    %60 = vector.load %arg12[%c0_44, %c0_45] : memref<64x128xbf16, #tpu.memory_space<vmem>>, vector<64x128xbf16>
    tpu.vector_store %arg12[%c0_44, %c0_45], %59 {strides = array<i32>} : memref<64x128xbf16, #tpu.memory_space<vmem>>, vector<64x128xbf16>,
    return
  }
  func.func @transform_0(%arg0: i32) -> (i32, i32) {
    %c0_i32 = arith.constant 0 : i32
    %c0_i32_0 = arith.constant 0 : i32
    return %arg0, %c0_i32 : i32, i32
  }
  func.func @transform_1(%arg0: i32) -> (i32, i32) {
    %c0_i32 = arith.constant 0 : i32
    %c0_i32_0 = arith.constant 0 : i32
    %c0_i32_1 = arith.constant 0 : i32
    return %c0_i32, %c0_i32_0 : i32, i32
  }
  func.func @transform_2(%arg0: i32) -> (i32, i32) {
    %c0_i32 = arith.constant 0 : i32
    %c0_i32_0 = arith.constant 0 : i32
    %c0_i32_1 = arith.constant 0 : i32
    return %c0_i32, %c0_i32_0 : i32, i32
  }
  func.func @transform_3(%arg0: i32) -> (i32, i32, i32) {
    %c0_i32 = arith.constant 0 : i32
    %c0_i32_0 = arith.constant 0 : i32
    %c0_i32_1 = arith.constant 0 : i32
    %c0_i32_2 = arith.constant 0 : i32
    return %c0_i32, %c0_i32_0, %c0_i32_1 : i32, i32, i32
  }
  func.func @transform_4(%arg0: i32) -> (i32, i32, i32) {
    %c0_i32 = arith.constant 0 : i32
    %c0_i32_0 = arith.constant 0 : i32
    %c0_i32_1 = arith.constant 0 : i32
    %c0_i32_2 = arith.constant 0 : i32
    return %c0_i32, %c0_i32_0, %c0_i32_1 : i32, i32, i32
  }
  func.func @transform_5(%arg0: i32) -> (i32, i32, i32) {
    %c0_i32 = arith.constant 0 : i32
    %c0_i32_0 = arith.constant 0 : i32
    %c0_i32_1 = arith.constant 0 : i32
    %c0_i32_2 = arith.constant 0 : i32
    return %c0_i32, %c0_i32_0, %c0_i32_1 : i32, i32, i32
  }
  func.func @transform_6(%arg0: i32) -> (i32, i32, i32) {
    %c0_i32 = arith.constant 0 : i32
    %c0_i32_0 = arith.constant 0 : i32
    %c0_i32_1 = arith.constant 0 : i32
    %c0_i32_2 = arith.constant 0 : i32
    return %c0_i32, %c0_i32_0, %c0_i32_1 : i32, i32, i32
  }
  func.func @transform_7(%arg0: i32) -> (i32, i32) {
    %c0_i32 = arith.constant 0 : i32
    %c0_i32_0 = arith.constant 0 : i32
    %c0_i32_1 = arith.constant 0 : i32
    return %c0_i32, %c0_i32_0 : i32, i32
  }
  func.func @transform_8(%arg0: i32) -> (i32, i32) {
    %c0_i32 = arith.constant 0 : i32
    %c0_i32_0 = arith.constant 0 : i32
    %c0_i32_1 = arith.constant 0 : i32
    return %c0_i32, %c0_i32_0 : i32, i32
  }
  func.func @transform_9(%arg0: i32) -> (i32, i32) {
    %c0_i32 = arith.constant 0 : i32
    %c0_i32_0 = arith.constant 0 : i32
    %c0_i32_1 = arith.constant 0 : i32
    return %c0_i32, %c0_i32_0 : i32, i32
  }
  func.func @transform_10(%arg0: i32) -> (i32, i32) {
    %c0_i32 = arith.constant 0 : i32
    %c0_i32_0 = arith.constant 0 : i32
    %c0_i32_1 = arith.constant 0 : i32
    return %c0_i32, %c0_i32_0 : i32, i32
  }
  func.func @transform_11(%arg0: i32) -> (i32, i32) {
    %c0_i32 = arith.constant 0 : i32
    %c0_i32_0 = arith.constant 0 : i32
    return %arg0, %c0_i32 : i32, i32
  }
}

</mosaic_0001>

<llo_original>
// kernel: resnet_forward.1
$region0: #{resnet_forward.1}
  #allocation0 [shape = 'u32[]', space=smem, size = 0x4, offset = 0x4, fixed_abs, tag = 'smem constant byte address 0x4 - core index']
  #allocation1 [shape = 'u32[72,128]{1,0:T(1,128)}', space=vmem, size = 0x9000, scoped, tag = 'internal scratch']
  %s0 = inlined_call_operand.vmem [shape: f32[256,16], index: 0, kind: input, shape index: {}]
  %s1 = inlined_call_operand.vmem [shape: bf16[16,128], index: 1, kind: input, shape index: {}]
  %s2 = inlined_call_operand.vmem [shape: f32[1,128], index: 2, kind: input, shape index: {}]
  %s3 = inlined_call_operand.vmem [shape: bf16[2,128,128], index: 3, kind: input, shape index: {}]
  %s4 = inlined_call_operand.vmem [shape: f32[2,1,128], index: 4, kind: input, shape index: {}]
  %s5 = inlined_call_operand.vmem [shape: bf16[2,128,128], index: 5, kind: input, shape index: {}]
  %s6 = inlined_call_operand.vmem [shape: f32[2,1,128], index: 6, kind: input, shape index: {}]
  %s7 = inlined_call_operand.vmem [shape: f32[1,128], index: 7, kind: input, shape index: {}]
  %s8 = inlined_call_operand.vmem [shape: f32[1,128], index: 8, kind: input, shape index: {}]
  %s9 = inlined_call_operand.hbm [shape: bf16[128,128], index: 9, kind: input, shape index: {}]
  %s10 = inlined_call_operand.vmem [shape: f32[1,128], index: 10, kind: input, shape index: {}]
  %s11 = inlined_call_operand.vmem [shape: bf16[256,128], index: 11, kind: output, shape index: {}]
  %s12 = sld [smem:[#allocation0]]
  $region81: #{resnet_forward.1} parent=0
    _
  %s14 = ssub.s32 1, %s12
  %s15 = scalar_select 0, %s14, %s12
  $region1: #{resnet_forward.1} parent=0
    #allocation2 [shape = 'u8[32768]{0}', space=vmem, size = 0x8000, scoped, tag = 'input window, operand 9, single buffered']
    #allocation3 [shape = 's32[2]{0}', space=sflag, size = 0x8, scoped, tag = 'scoped memory for resnet_forward.1']
    %16 = vsyncpa [#allocation3], 0
    loop: start=0, step=1, limit=6
    $region2: #{resnet_forward.1} parent=1 // loop_pre_header
      _
    $region3: #{resnet_forward.1} parent=1 // loop_header
      %s18 = sphi 0, %s22
      %p19 = scmp.ge.s32.totalorder %s18, 6
      %s28 = sphi 0, %s30
      %s31 = sphi 0, %s28
      %s32 = sphi 0, %s31
      %s48 = sphi 0, %s32
      %s52 = sphi 0, %s52
      %s54 = sphi 0, %s52
      %s55 = sphi 0, %s54
      %s69 = sphi 0, %s55
      %s73 = sphi 0, %s73
      %s75 = sphi 0, %s73
      %s76 = sphi 0, %s75
      %s90 = sphi 0, %s76
      %s94 = sphi 0, %s94
      %s96 = sphi 0, %s94
      %s97 = sphi 0, %s96
      %s111 = sphi 0, %s97
      %s115 = sphi 0, %s115
      %s117 = sphi 0, %s115
      %s118 = sphi 0, %s117
      %s132 = sphi 0, %s118
      %s136 = sphi 0, %s136
      %s138 = sphi 0, %s136
      %s139 = sphi 0, %s138
      %s153 = sphi 0, %s139
      %s157 = sphi 0, %s157
      %s159 = sphi 0, %s157
      %s160 = sphi 0, %s159
      %s174 = sphi 0, %s160
      %s178 = sphi 0, %s178
      %s180 = sphi 0, %s178
      %s181 = sphi 0, %s180
      %s195 = sphi 0, %s181
      %s199 = sphi 0, %s199
      %s201 = sphi 0, %s199
      %s202 = sphi 0, %s201
      %s216 = sphi 0, %s202
      %s220 = sphi 0, %s220
      %s222 = sphi 0, %s220
      %s223 = sphi 0, %s222
      %s237 = sphi 0, %s223
      %s241 = sphi 0, %s241
      %s243 = sphi 0, %s241
      %s244 = sphi 0, %s243
      %s258 = sphi 0, %s244
      %s264 = sphi 0, %s266
      %s267 = sphi 0, %s264
      %s268 = sphi 0, %s267
      %s284 = sphi 0, %s268
    $region4: #{resnet_forward.1} parent=1 // loop_header_branch
      %21 = sbr.rel (%p19) target = $region8
    $region5: #{resnet_forward.1} parent=1 // loop_body
      %s23 = ssub.s32 %s18, 1
      %s24 = ssub.s32 %s18, 2
      %s25 = sadd.s32 %s18, 1
      %s26 = ssub.s32 %s18, %s25
      %p27 = scmp.eq.s32.totalorder %s26, 0
      %s29 = sadd.s32 %s28, 1
      %s30 = scalar_select %p27, %s28, %s29
      %p33 = pneg %p27
      %p34 = scmp.eq.s32.totalorder %s18, 3
      %p35 = por %p33, %p34
      %p36 = scmp.ne.s32.totalorder %s28, %s31
      %p37 = scmp.eq.s32.totalorder %s18, 0
      %p38 = por %p36, %p37
      %p39 = scmp.ne.s32.totalorder %s28, %s31
      %p40 = scmp.eq.s32.totalorder %s23, 3
      %p41 = por %p39, %p40
      %p42 = scmp.ne.s32.totalorder %s31, %s32
      %p43 = scmp.eq.s32.totalorder %s23, 0
      %p44 = por %p42, %p43
      %p45 = scmp.ne.s32.totalorder %s31, %s32
      %p46 = scmp.eq.s32.totalorder %s24, 3
      %p47 = por %p45, %p46
      %p49 = scmp.ne.s32.totalorder %s32, %s48
      %p50 = scmp.eq.s32.totalorder %s24, 0
      %p51 = por %p49, %p50
      %s53 = sadd.s32 %s52, 1
      %p56 = scmp.eq.s32.totalorder %s18, 3
      %p57 = scmp.ne.s32.totalorder %s52, %s54
      %p58 = scmp.eq.s32.totalorder %s18, 0
      %p59 = por %p57, %p58
      %p60 = scmp.ne.s32.totalorder %s52, %s54
      %p61 = scmp.eq.s32.totalorder %s23, 3
      %p62 = por %p60, %p61
      %p63 = scmp.ne.s32.totalorder %s54, %s55
      %p64 = scmp.eq.s32.totalorder %s23, 0
      %p65 = por %p63, %p64
      %p66 = scmp.ne.s32.totalorder %s54, %s55
      %p67 = scmp.eq.s32.totalorder %s24, 3
      %p68 = por %p66, %p67
      %p70 = scmp.ne.s32.totalorder %s55, %s69
      %p71 = scmp.eq.s32.totalorder %s24, 0
      %p72 = por %p70, %p71
      %s74 = sadd.s32 %s73, 1
      %p77 = scmp.eq.s32.totalorder %s18, 3
      %p78 = scmp.ne.s32.totalorder %s73, %s75
      %p79 = scmp.eq.s32.totalorder %s18, 0
      %p80 = por %p78, %p79
      %p81 = scmp.ne.s32.totalorder %s73, %s75
      %p82 = scmp.eq.s32.totalorder %s23, 3
      %p83 = por %p81, %p82
      %p84 = scmp.ne.s32.totalorder %s75, %s76
      %p85 = scmp.eq.s32.totalorder %s23, 0
      %p86 = por %p84, %p85
      %p87 = scmp.ne.s32.totalorder %s75, %s76
      %p88 = scmp.eq.s32.totalorder %s24, 3
      %p89 = por %p87, %p88
      %p91 = scmp.ne.s32.totalorder %s76, %s90
      %p92 = scmp.eq.s32.totalorder %s24, 0
      %p93 = por %p91, %p92
      %s95 = sadd.s32 %s94, 1
      %p98 = scmp.eq.s32.totalorder %s18, 3
      %p99 = scmp.ne.s32.totalorder %s94, %s96
      %p100 = scmp.eq.s32.totalorder %s18, 0
      %p101 = por %p99, %p100
      %p102 = scmp.ne.s32.totalorder %s94, %s96
      %p103 = scmp.eq.s32.totalorder %s23, 3
      %p104 = por %p102, %p103
      %p105 = scmp.ne.s32.totalorder %s96, %s97
      %p106 = scmp.eq.s32.totalorder %s23, 0
      %p107 = por %p105, %p106
      %p108 = scmp.ne.s32.totalorder %s96, %s97
      %p109 = scmp.eq.s32.totalorder %s24, 3
      %p110 = por %p108, %p109
      %p112 = scmp.ne.s32.totalorder %s97, %s111
      %p113 = scmp.eq.s32.totalorder %s24, 0
      %p114 = por %p112, %p113
      %s116 = sadd.s32 %s115, 1
      %p119 = scmp.eq.s32.totalorder %s18, 3
      %p120 = scmp.ne.s32.totalorder %s115, %s117
      %p121 = scmp.eq.s32.totalorder %s18, 0
      %p122 = por %p120, %p121
      %p123 = scmp.ne.s32.totalorder %s115, %s117
      %p124 = scmp.eq.s32.totalorder %s23, 3
      %p125 = por %p123, %p124
      %p126 = scmp.ne.s32.totalorder %s117, %s118
      %p127 = scmp.eq.s32.totalorder %s23, 0
      %p128 = por %p126, %p127
      %p129 = scmp.ne.s32.totalorder %s117, %s118
      %p130 = scmp.eq.s32.totalorder %s24, 3
      %p131 = por %p129, %p130
      %p133 = scmp.ne.s32.totalorder %s118, %s132
      %p134 = scmp.eq.s32.totalorder %s24, 0
      %p135 = por %p133, %p134
      %s137 = sadd.s32 %s136, 1
      %p140 = scmp.eq.s32.totalorder %s18, 3
      %p141 = scmp.ne.s32.totalorder %s136, %s138
      %p142 = scmp.eq.s32.totalorder %s18, 0
      %p143 = por %p141, %p142
      %p144 = scmp.ne.s32.totalorder %s136, %s138
      %p145 = scmp.eq.s32.totalorder %s23, 3
      %p146 = por %p144, %p145
      %p147 = scmp.ne.s32.totalorder %s138, %s139
      %p148 = scmp.eq.s32.totalorder %s23, 0
      %p149 = por %p147, %p148
      %p150 = scmp.ne.s32.totalorder %s138, %s139
      %p151 = scmp.eq.s32.totalorder %s24, 3
      %p152 = por %p150, %p151
      %p154 = scmp.ne.s32.totalorder %s139, %s153
      %p155 = scmp.eq.s32.totalorder %s24, 0
      %p156 = por %p154, %p155
      %s158 = sadd.s32 %s157, 1
      %p161 = scmp.eq.s32.totalorder %s18, 3
      %p162 = scmp.ne.s32.totalorder %s157, %s159
      %p163 = scmp.eq.s32.totalorder %s18, 0
      %p164 = por %p162, %p163
      %p165 = scmp.ne.s32.totalorder %s157, %s159
      %p166 = scmp.eq.s32.totalorder %s23, 3
      %p167 = por %p165, %p166
      %p168 = scmp.ne.s32.totalorder %s159, %s160
      %p169 = scmp.eq.s32.totalorder %s23, 0
      %p170 = por %p168, %p169
      %p171 = scmp.ne.s32.totalorder %s159, %s160
      %p172 = scmp.eq.s32.totalorder %s24, 3
      %p173 = por %p171, %p172
      %p175 = scmp.ne.s32.totalorder %s160, %s174
      %p176 = scmp.eq.s32.totalorder %s24, 0
      %p177 = por %p175, %p176
      %s179 = sadd.s32 %s178, 1
      %p182 = scmp.eq.s32.totalorder %s18, 3
      %p183 = scmp.ne.s32.totalorder %s178, %s180
      %p184 = scmp.eq.s32.totalorder %s18, 0
      %p185 = por %p183, %p184
      %p186 = scmp.ne.s32.totalorder %s178, %s180
      %p187 = scmp.eq.s32.totalorder %s23, 3
      %p188 = por %p186, %p187
      %p189 = scmp.ne.s32.totalorder %s180, %s181
      %p190 = scmp.eq.s32.totalorder %s23, 0
      %p191 = por %p189, %p190
      %p192 = scmp.ne.s32.totalorder %s180, %s181
      %p193 = scmp.eq.s32.totalorder %s24, 3
      %p194 = por %p192, %p193
      %p196 = scmp.ne.s32.totalorder %s181, %s195
      %p197 = scmp.eq.s32.totalorder %s24, 0
      %p198 = por %p196, %p197
      %s200 = sadd.s32 %s199, 1
      %p203 = scmp.eq.s32.totalorder %s18, 3
      %p204 = scmp.ne.s32.totalorder %s199, %s201
      %p205 = scmp.eq.s32.totalorder %s18, 0
      %p206 = por %p204, %p205
      %p207 = scmp.ne.s32.totalorder %s199, %s201
      %p208 = scmp.eq.s32.totalorder %s23, 3
      %p209 = por %p207, %p208
      %p210 = scmp.ne.s32.totalorder %s201, %s202
      %p211 = scmp.eq.s32.totalorder %s23, 0
      %p212 = por %p210, %p211
      %p213 = scmp.ne.s32.totalorder %s201, %s202
      %p214 = scmp.eq.s32.totalorder %s24, 3
      %p215 = por %p213, %p214
      %p217 = scmp.ne.s32.totalorder %s202, %s216
      %p218 = scmp.eq.s32.totalorder %s24, 0
      %p219 = por %p217, %p218
      %s221 = sadd.s32 %s220, 1
      %p224 = scmp.eq.s32.totalorder %s18, 3
      %p225 = scmp.ne.s32.totalorder %s220, %s222
      %p226 = scmp.eq.s32.totalorder %s18, 0
      %p227 = por %p225, %p226
      %p228 = scmp.ne.s32.totalorder %s220, %s222
      %p229 = scmp.eq.s32.totalorder %s23, 3
      %p230 = por %p228, %p229
      %p231 = scmp.ne.s32.totalorder %s222, %s223
      %p232 = scmp.eq.s32.totalorder %s23, 0
      %p233 = por %p231, %p232
      %p234 = scmp.ne.s32.totalorder %s222, %s223
      %p235 = scmp.eq.s32.totalorder %s24, 3
      %p236 = por %p234, %p235
      %p238 = scmp.ne.s32.totalorder %s223, %s237
      %p239 = scmp.eq.s32.totalorder %s24, 0
      %p240 = por %p238, %p239
      %s242 = sadd.s32 %s241, 1
      %p245 = scmp.eq.s32.totalorder %s18, 3
      %p246 = scmp.ne.s32.totalorder %s241, %s243
      %p247 = scmp.eq.s32.totalorder %s18, 0
      %p248 = por %p246, %p247
      %p249 = scmp.ne.s32.totalorder %s241, %s243
      %p250 = scmp.eq.s32.totalorder %s23, 3
      %p251 = por %p249, %p250
      %p252 = scmp.ne.s32.totalorder %s243, %s244
      %p253 = scmp.eq.s32.totalorder %s23, 0
      %p254 = por %p252, %p253
      %p255 = scmp.ne.s32.totalorder %s243, %s244
      %p256 = scmp.eq.s32.totalorder %s24, 3
      %p257 = por %p255, %p256
      %p259 = scmp.ne.s32.totalorder %s244, %s258
      %p260 = scmp.eq.s32.totalorder %s24, 0
      %p261 = por %p259, %p260
      %s262 = ssub.s32 %s18, %s25
      %p263 = scmp.eq.s32.totalorder %s262, 0
      %s265 = sadd.s32 %s264, 1
      %s266 = scalar_select %p263, %s264, %s265
      %p269 = pneg %p263
      %p270 = scmp.eq.s32.totalorder %s18, 3
      %p271 = por %p269, %p270
      %p272 = scmp.ne.s32.totalorder %s264, %s267
      %p273 = scmp.eq.s32.totalorder %s18, 0
      %p274 = por %p272, %p273
      %p275 = scmp.ne.s32.totalorder %s264, %s267
      %p276 = scmp.eq.s32.totalorder %s23, 3
      %p277 = por %p275, %p276
      %p278 = scmp.ne.s32.totalorder %s267, %s268
      %p279 = scmp.eq.s32.totalorder %s23, 0
      %p280 = por %p278, %p279
      %p281 = scmp.ne.s32.totalorder %s267, %s268
      %p282 = scmp.eq.s32.totalorder %s24, 3
      %p283 = por %p281, %p282
      %p285 = scmp.ne.s32.totalorder %s268, %s284
      %p286 = scmp.eq.s32.totalorder %s24, 0
      %p287 = por %p285, %p286
      %p288 = scmp.le.s32.totalorder 1, %s18
      %p289 = scmp.lt.s32.totalorder %s18, 5
      %p290 = pnand %p288, %p289
      %p291 = pneg %p290
      // Predicated region
      $region9: #{resnet_forward.1} parent=5 // pred_check
        _
      $region10: #{resnet_forward.1} parent=5 // pred_check_branch
        %293 = sbr.rel (%p290) target = $region12
      $region11: #{resnet_forward.1} parent=5 // pred_region
        %s294 = ssub.s32 %s18, 1
        // Predicated region
        $region13: #{resnet_forward.1} parent=11 // pred_check
          %p295 = pneg %p65
        $region14: #{resnet_forward.1} parent=11 // pred_check_branch
          %297 = sbr.rel (%p295) target = $region16
        $region15: #{resnet_forward.1} parent=11 // pred_region
          _
        $region16: #{resnet_forward.1} parent=11 // pred_fallthru
          _
        // Predicated region
        $region17: #{resnet_forward.1} parent=11 // pred_check
          %p298 = pneg %p86
        $region18: #{resnet_forward.1} parent=11 // pred_check_branch
          %300 = sbr.rel (%p298) target = $region20
        $region19: #{resnet_forward.1} parent=11 // pred_region
          _
        $region20: #{resnet_forward.1} parent=11 // pred_fallthru
          _
        // Predicated region
        $region21: #{resnet_forward.1} parent=11 // pred_check
          %p301 = pneg %p107
        $region22: #{resnet_forward.1} parent=11 // pred_check_branch
          %303 = sbr.rel (%p301) target = $region24
        $region23: #{resnet_forward.1} parent=11 // pred_region
          _
        $region24: #{resnet_forward.1} parent=11 // pred_fallthru
          _
        // Predicated region
        $region25: #{resnet_forward.1} parent=11 // pred_check
          %p304 = pneg %p128
        $region26: #{resnet_forward.1} parent=11 // pred_check_branch
          %306 = sbr.rel (%p304) target = $region28
        $region27: #{resnet_forward.1} parent=11 // pred_region
          _
        $region28: #{resnet_forward.1} parent=11 // pred_fallthru
          _
        // Predicated region
        $region29: #{resnet_forward.1} parent=11 // pred_check
          %p307 = pneg %p149
        $region30: #{resnet_forward.1} parent=11 // pred_check_branch
          %309 = sbr.rel (%p307) target = $region32
        $region31: #{resnet_forward.1} parent=11 // pred_region
          _
        $region32: #{resnet_forward.1} parent=11 // pred_fallthru
          _
        // Predicated region
        $region33: #{resnet_forward.1} parent=11 // pred_check
          %p310 = pneg %p170
        $region34: #{resnet_forward.1} parent=11 // pred_check_branch
          %312 = sbr.rel (%p310) target = $region36
        $region35: #{resnet_forward.1} parent=11 // pred_region
          _
        $region36: #{resnet_forward.1} parent=11 // pred_fallthru
          _
        // Predicated region
        $region37: #{resnet_forward.1} parent=11 // pred_check
          %p313 = pneg %p191
        $region38: #{resnet_forward.1} parent=11 // pred_check_branch
          %315 = sbr.rel (%p313) target = $region40
        $region39: #{resnet_forward.1} parent=11 // pred_region
          _
        $region40: #{resnet_forward.1} parent=11 // pred_fallthru
          _
        // Predicated region
        $region41: #{resnet_forward.1} parent=11 // pred_check
          %p316 = pneg %p212
        $region42: #{resnet_forward.1} parent=11 // pred_check_branch
          %318 = sbr.rel (%p316) target = $region44
        $region43: #{resnet_forward.1} parent=11 // pred_region
          _
        $region44: #{resnet_forward.1} parent=11 // pred_fallthru
          _
        // Predicated region
        $region45: #{resnet_forward.1} parent=11 // pred_check
          %p319 = pneg %p233
        $region46: #{resnet_forward.1} parent=11 // pred_check_branch
          %321 = sbr.rel (%p319) target = $region48
        $region47: #{resnet_forward.1} parent=11 // pred_region
          %323 = vsyncadd [#allocation3], 0
          %s324 = sshll.u32 %s9, 4
          %s325 = int_to_ptr.hbm [resolvable:$true] %s324
          %s326 = sshll.u32 [#allocation2], 4
          %s327 = int_to_ptr.vmem [resolvable:$true] %s326
          %332 = dma.hbm_to_vmem [thread:$0]  %s325, 1024, %s327, [#allocation3], 64, 64, 4
        $region48: #{resnet_forward.1} parent=11 // pred_fallthru
          _
        // Predicated region
        $region49: #{resnet_forward.1} parent=11 // pred_check
          %p333 = pneg %p254
        $region50: #{resnet_forward.1} parent=11 // pred_check_branch
          %335 = sbr.rel (%p333) target = $region52
        $region51: #{resnet_forward.1} parent=11 // pred_region
          _
        $region52: #{resnet_forward.1} parent=11 // pred_fallthru
          _
      $region12: #{resnet_forward.1} parent=5 // pred_fallthru
        _
      %p336 = scmp.lt.s32.totalorder %s18, 4
      // Predicated region
      $region53: #{resnet_forward.1} parent=5 // pred_check
        %p337 = pneg %p336
      $region54: #{resnet_forward.1} parent=5 // pred_check_branch
        %339 = sbr.rel (%p337) target = $region56
      $region55: #{resnet_forward.1} parent=5 // pred_region
        // Predicated region
        $region57: #{resnet_forward.1} parent=55 // pred_check
          %p340 = pneg %p38
        $region58: #{resnet_forward.1} parent=55 // pred_check_branch
          %342 = sbr.rel (%p340) target = $region60
        $region59: #{resnet_forward.1} parent=55 // pred_region
          %s343 = smul.u32 8, %s18
          %p344 = scmp.lt.s32.totalorder %s343, 31
          %s345 = scalar_select %p344, %s343, 31
          %s346 = smul.addr %s345, 8
          %s347 = scalar_lea.vmem %s0, %s346
          %s348 = smul.u32 8, %s18
        $region60: #{resnet_forward.1} parent=55 // pred_fallthru
          _
      $region56: #{resnet_forward.1} parent=5 // pred_fallthru
        _
      %p349 = scmp.le.s32.totalorder 1, %s18
      %p350 = scmp.lt.s32.totalorder %s18, 5
      %p351 = pnand %p349, %p350
      %p352 = pneg %p351
      // Predicated region
      $region61: #{resnet_forward.1} parent=5 // pred_check
        _
      $region62: #{resnet_forward.1} parent=5 // pred_check_branch
        %354 = sbr.rel (%p351) target = $region64
      $region63: #{resnet_forward.1} parent=5 // pred_region
        %s355 = ssub.s32 %s18, 1
        // Predicated region
        $region65: #{resnet_forward.1} parent=63 // pred_check
          %p356 = pneg %p233
        $region66: #{resnet_forward.1} parent=63 // pred_check_branch
          %358 = sbr.rel (%p356) target = $region68
        $region67: #{resnet_forward.1} parent=63 // pred_region
          %360 = dma.done [#allocation3], 1024
        $region68: #{resnet_forward.1} parent=63 // pred_fallthru
          _
        %s361 = smul.u32 8, %s23
        %p362 = scmp.lt.s32.totalorder %s361, 31
        %s363 = scalar_select %p362, %s361, 31
        %s364 = smul.addr %s363, 8
        %s365 = scalar_lea.vmem %s0, %s364
        %p366 = pneg %p44
        %p367 = pneg %p41
        %p368 = pneg %p65
        %p369 = pneg %p62
        %p370 = pneg %p86
        %p371 = pneg %p83
        %p372 = pneg %p107
        %p373 = pneg %p104
        %p374 = pneg %p128
        %p375 = pneg %p125
        %p376 = pneg %p149
        %p377 = pneg %p146
        %p378 = pneg %p170
        %p379 = pneg %p167
        %p380 = pneg %p191
        %p381 = pneg %p188
        %p382 = pneg %p212
        %p383 = pneg %p209
        %p384 = pneg %p233
        %p385 = pneg %p230
        %p386 = pneg %p254
        %p387 = pneg %p251
        %p388 = pneg %p280
        %p389 = pneg %p277
        %s390 = smul.u32 8, %s23
        %p391 = scmp.lt.s32.totalorder %s390, 31
        %s392 = scalar_select %p391, %s390, 31
        %s393 = smul.addr %s392, 4
        %s394 = scalar_lea.vmem %s11, %s393
        %s395 = smul.u32 8, %s23
        %p396 = scmp.lt.s32.totalorder %s395, 31
        %s397 = scalar_select %p396, %s395, 31
        %s398 = smul.addr %s397, 8
        %s399 = scalar_lea.vmem %s0, %s398
        %s400 = smul.u32 8, %s23
        %s401 = smul.u32 8, %s23
        %p402 = scmp.lt.s32.totalorder %s401, 31
        %s403 = scalar_select %p402, %s401, 31
        %s404 = smul.addr %s403, 4
        %s405 = scalar_lea.vmem %s11, %s404
        %s406 = smul.u32 8, %s23
        %v408 = vld [vmem:[%s399] sm:$0xff]
        %v409 = vld [vmem:[%s399 + $0x8] sm:$0xff]
        %v410 = vld [vmem:[%s399 + $0x10] sm:$0xff]
        %v411 = vld [vmem:[%s399 + $0x18] sm:$0xff]
        %v412 = vld [vmem:[%s399 + $0x20] sm:$0xff]
        %v413 = vld [vmem:[%s399 + $0x28] sm:$0xff]
        %v414 = vld [vmem:[%s399 + $0x30] sm:$0xff]
        %v415 = vld [vmem:[%s399 + $0x38] sm:$0xff]
        %v416 = vpack.c.bf16 %v409, %v408
        %v417 = vpack.c.bf16 %v411, %v410
        %v418 = vpack.c.bf16 %v413, %v412
        %v419 = vpack.c.bf16 %v415, %v414
        %v420 = vld [vmem:[%s1] sm:$0xf]
        %v421 = vld [vmem:[%s1 + $0x4] sm:$0xf]
        %v422 = vld [vmem:[%s2] sm:$0x1]
        %v424 = vperm.slane %v422, 0
        %v428 = vunpack.c.l.b16 %v420
        %v429 = vunpack.c.l.b16 %v421
        %v430 = vpack.c.b16 %v429, %v428
        %vm432 = vcmask 130048
        %v434 = vsel %vm432, %v416, 0
        %v437 = vsel %vm432, %v417, 0
        %v440 = vsel %vm432, %v418, 0
        %v443 = vsel %vm432, %v419, 0
        %445 = vmatpush.bf16.msra.mxu0 0
        %446 = vmatpush.bf16.msra.mxu0 0
        %447 = vmatpush.bf16.msra.mxu0 0
        %448 = vmatpush.bf16.msra.mxu0 0
        %449 = vmatpush.bf16.msra.mxu0 0
        %450 = vmatpush.bf16.msra.mxu0 0
        %451 = vmatpush.bf16.msra.mxu0 0
        %452 = vmatpush.bf16.msra.mxu0 %v430
        %453 = vmatmul.bf16.gmra.mxu0 %v434
        %v454 = vpop.f32.mrf.mxu0
        %v455 = vadd.f32 %v424, %v454
        %v456 = vpop.f32.mrf.mxu0
        %v457 = vadd.f32 %v424, %v456
        %458 = vmatmul.bf16.gmra.mxu0 %v437
        %v459 = vpop.f32.mrf.mxu0
        %v460 = vadd.f32 %v424, %v459
        %v461 = vpop.f32.mrf.mxu0
        %v462 = vadd.f32 %v424, %v461
        %463 = vmatmul.bf16.gmra.mxu0 %v440
        %v464 = vpop.f32.mrf.mxu0
        %v465 = vadd.f32 %v424, %v464
        %v466 = vpop.f32.mrf.mxu0
        %v467 = vadd.f32 %v424, %v466
        %468 = vmatmul.bf16.gmra.mxu0 %v443
        %v469 = vpop.f32.mrf.mxu0
        %v470 = vadd.f32 %v424, %v469
        %v471 = vpop.f32.mrf.mxu0
        %v472 = vadd.f32 %v424, %v471
        %473 = vdwg.mxu0
        %v474 = vld [vmem:[%s3] sm:$0xf]
        %v475 = vld [vmem:[%s3 + $0x4] sm:$0xf]
        %v476 = vld [vmem:[%s3 + $0x8] sm:$0xf]
        %v477 = vld [vmem:[%s3 + $0xc] sm:$0xf]
        %v478 = vld [vmem:[%s3 + $0x10] sm:$0xf]
        %v479 = vld [vmem:[%s3 + $0x14] sm:$0xf]
        %v480 = vld [vmem:[%s3 + $0x18] sm:$0xf]
        %v481 = vld [vmem:[%s3 + $0x1c] sm:$0xf]
        %v482 = vld [vmem:[%s3 + $0x20] sm:$0xf]
        %v483 = vld [vmem:[%s3 + $0x24] sm:$0xf]
        %v484 = vld [vmem:[%s3 + $0x28] sm:$0xf]
        %v485 = vld [vmem:[%s3 + $0x2c] sm:$0xf]
        %v486 = vld [vmem:[%s3 + $0x30] sm:$0xf]
        %v487 = vld [vmem:[%s3 + $0x34] sm:$0xf]
        %v488 = vld [vmem:[%s3 + $0x38] sm:$0xf]
        %v489 = vld [vmem:[%s3 + $0x3c] sm:$0xf]
        %v490 = vld [vmem:[%s4] sm:$0x1]
        %v491 = vld [vmem:[%s5] sm:$0xf]
        %v492 = vld [vmem:[%s5 + $0x4] sm:$0xf]
        %v493 = vld [vmem:[%s5 + $0x8] sm:$0xf]
        %v494 = vld [vmem:[%s5 + $0xc] sm:$0xf]
        %v495 = vld [vmem:[%s5 + $0x10] sm:$0xf]
        %v496 = vld [vmem:[%s5 + $0x14] sm:$0xf]
        %v497 = vld [vmem:[%s5 + $0x18] sm:$0xf]
        %v498 = vld [vmem:[%s5 + $0x1c] sm:$0xf]
        %v499 = vld [vmem:[%s5 + $0x20] sm:$0xf]
        %v500 = vld [vmem:[%s5 + $0x24] sm:$0xf]
        %v501 = vld [vmem:[%s5 + $0x28] sm:$0xf]
        %v502 = vld [vmem:[%s5 + $0x2c] sm:$0xf]
        %v503 = vld [vmem:[%s5 + $0x30] sm:$0xf]
        %v504 = vld [vmem:[%s5 + $0x34] sm:$0xf]
        %v505 = vld [vmem:[%s5 + $0x38] sm:$0xf]
        %v506 = vld [vmem:[%s5 + $0x3c] sm:$0xf]
        %v507 = vld [vmem:[%s6] sm:$0x1]
        %v508 = vpack.c.bf16 %v457, %v455
        %v509 = vpack.c.bf16 %v462, %v460
        %v510 = vpack.c.bf16 %v467, %v465
        %v511 = vpack.c.bf16 %v472, %v470
        %v513 = vperm.slane %v490, 0
        %v531 = vunpack.c.l.b16 %v474
        %v532 = vunpack.c.l.b16 %v475
        %v533 = vunpack.c.l.b16 %v476
        %v534 = vunpack.c.l.b16 %v477
        %v535 = vunpack.c.l.b16 %v478
        %v536 = vunpack.c.l.b16 %v479
        %v537 = vunpack.c.l.b16 %v480
        %v538 = vunpack.c.l.b16 %v481
        %v539 = vunpack.c.l.b16 %v482
        %v540 = vunpack.c.l.b16 %v483
        %v541 = vunpack.c.l.b16 %v484
        %v542 = vunpack.c.l.b16 %v485
        %v543 = vunpack.c.l.b16 %v486
        %v544 = vunpack.c.l.b16 %v487
        %v545 = vunpack.c.l.b16 %v488
        %v546 = vunpack.c.l.b16 %v489
        %v547 = vpack.c.b16 %v532, %v531
        %v548 = vpack.c.b16 %v534, %v533
        %v549 = vpack.c.b16 %v536, %v535
        %v550 = vpack.c.b16 %v538, %v537
        %v551 = vpack.c.b16 %v540, %v539
        %v552 = vpack.c.b16 %v542, %v541
        %v553 = vpack.c.b16 %v544, %v543
        %v554 = vpack.c.b16 %v546, %v545
        %563 = vmatpush.bf16.msra.mxu0 %v554
        %564 = vmatpush.bf16.msra.mxu0 %v553
        %565 = vmatpush.bf16.msra.mxu0 %v552
        %566 = vmatpush.bf16.msra.mxu0 %v551
        %567 = vmatpush.bf16.msra.mxu0 %v550
        %568 = vmatpush.bf16.msra.mxu0 %v549
        %569 = vmatpush.bf16.msra.mxu0 %v548
        %570 = vmatpush.bf16.msra.mxu0 %v547
        %571 = vmatmul.bf16.gmra.mxu0 %v508
        %v572 = vpop.f32.mrf.mxu0
        %v573 = vadd.f32 %v513, %v572
        %v574 = vpop.f32.mrf.mxu0
        %v575 = vadd.f32 %v513, %v574
        %576 = vmatmul.bf16.gmra.mxu0 %v509
        %v577 = vpop.f32.mrf.mxu0
        %v578 = vadd.f32 %v513, %v577
        %v579 = vpop.f32.mrf.mxu0
        %v580 = vadd.f32 %v513, %v579
        %581 = vmatmul.bf16.gmra.mxu0 %v510
        %v582 = vpop.f32.mrf.mxu0
        %v583 = vadd.f32 %v513, %v582
        %v584 = vpop.f32.mrf.mxu0
        %v585 = vadd.f32 %v513, %v584
        %586 = vmatmul.bf16.gmra.mxu0 %v511
        %v587 = vpop.f32.mrf.mxu0
        %v588 = vadd.f32 %v513, %v587
        %v589 = vpop.f32.mrf.mxu0
        %v590 = vadd.f32 %v513, %v589
        %591 = vdwg.mxu0
        %v592 = vmax.f32 %v573, 0.0
        %v593 = vmax.f32 %v575, 0.0
        %v594 = vmax.f32 %v578, 0.0
        %v595 = vmax.f32 %v580, 0.0
        %v596 = vmax.f32 %v583, 0.0
        %v597 = vmax.f32 %v585, 0.0
        %v598 = vmax.f32 %v588, 0.0
        %v599 = vmax.f32 %v590, 0.0
        %v600 = vpack.c.bf16 %v593, %v592
        %v601 = vpack.c.bf16 %v595, %v594
        %v602 = vpack.c.bf16 %v597, %v596
        %v603 = vpack.c.bf16 %v599, %v598
        %v605 = vperm.slane %v507, 0
        %v623 = vunpack.c.l.b16 %v491
        %v624 = vunpack.c.l.b16 %v492
        %v625 = vunpack.c.l.b16 %v493
        %v626 = vunpack.c.l.b16 %v494
        %v627 = vunpack.c.l.b16 %v495
        %v628 = vunpack.c.l.b16 %v496
        %v629 = vunpack.c.l.b16 %v497
        %v630 = vunpack.c.l.b16 %v498
        %v631 = vunpack.c.l.b16 %v499
        %v632 = vunpack.c.l.b16 %v500
        %v633 = vunpack.c.l.b16 %v501
        %v634 = vunpack.c.l.b16 %v502
        %v635 = vunpack.c.l.b16 %v503
        %v636 = vunpack.c.l.b16 %v504
        %v637 = vunpack.c.l.b16 %v505
        %v638 = vunpack.c.l.b16 %v506
        %v639 = vpack.c.b16 %v624, %v623
        %v640 = vpack.c.b16 %v626, %v625
        %v641 = vpack.c.b16 %v628, %v627
        %v642 = vpack.c.b16 %v630, %v629
        %v643 = vpack.c.b16 %v632, %v631
        %v644 = vpack.c.b16 %v634, %v633
        %v645 = vpack.c.b16 %v636, %v635
        %v646 = vpack.c.b16 %v638, %v637
        %655 = vmatpush.bf16.msra.mxu0 %v646
        %656 = vmatpush.bf16.msra.mxu0 %v645
        %657 = vmatpush.bf16.msra.mxu0 %v644
        %658 = vmatpush.bf16.msra.mxu0 %v643
        %659 = vmatpush.bf16.msra.mxu0 %v642
        %660 = vmatpush.bf16.msra.mxu0 %v641
        %661 = vmatpush.bf16.msra.mxu0 %v640
        %662 = vmatpush.bf16.msra.mxu0 %v639
        %663 = vmatmul.bf16.gmra.mxu0 %v600
        %v664 = vpop.f32.mrf.mxu0
        %v665 = vadd.f32 %v605, %v664
        %v666 = vpop.f32.mrf.mxu0
        %v667 = vadd.f32 %v605, %v666
        %668 = vmatmul.bf16.gmra.mxu0 %v601
        %v669 = vpop.f32.mrf.mxu0
        %v670 = vadd.f32 %v605, %v669
        %v671 = vpop.f32.mrf.mxu0
        %v672 = vadd.f32 %v605, %v671
        %673 = vmatmul.bf16.gmra.mxu0 %v602
        %v674 = vpop.f32.mrf.mxu0
        %v675 = vadd.f32 %v605, %v674
        %v676 = vpop.f32.mrf.mxu0
        %v677 = vadd.f32 %v605, %v676
        %678 = vmatmul.bf16.gmra.mxu0 %v603
        %v679 = vpop.f32.mrf.mxu0
        %v680 = vadd.f32 %v605, %v679
        %v681 = vpop.f32.mrf.mxu0
        %v682 = vadd.f32 %v605, %v681
        %683 = vdwg.mxu0
        %v684 = vadd.f32 %v455, %v665
        %v685 = vadd.f32 %v457, %v667
        %v686 = vadd.f32 %v460, %v670
        %v687 = vadd.f32 %v462, %v672
        %v688 = vadd.f32 %v465, %v675
        %v689 = vadd.f32 %v467, %v677
        %v690 = vadd.f32 %v470, %v680
        %v691 = vadd.f32 %v472, %v682
        %s692 = scalar_lea.vmem %s3, 64
        %v693 = vld [vmem:[%s692] sm:$0xf]
        %v694 = vld [vmem:[%s692 + $0x4] sm:$0xf]
        %v695 = vld [vmem:[%s692 + $0x8] sm:$0xf]
        %v696 = vld [vmem:[%s692 + $0xc] sm:$0xf]
        %v697 = vld [vmem:[%s692 + $0x10] sm:$0xf]
        %v698 = vld [vmem:[%s692 + $0x14] sm:$0xf]
        %v699 = vld [vmem:[%s692 + $0x18] sm:$0xf]
        %v700 = vld [vmem:[%s692 + $0x1c] sm:$0xf]
        %v701 = vld [vmem:[%s692 + $0x20] sm:$0xf]
        %v702 = vld [vmem:[%s692 + $0x24] sm:$0xf]
        %v703 = vld [vmem:[%s692 + $0x28] sm:$0xf]
        %v704 = vld [vmem:[%s692 + $0x2c] sm:$0xf]
        %v705 = vld [vmem:[%s692 + $0x30] sm:$0xf]
        %v706 = vld [vmem:[%s692 + $0x34] sm:$0xf]
        %v707 = vld [vmem:[%s692 + $0x38] sm:$0xf]
        %v708 = vld [vmem:[%s692 + $0x3c] sm:$0xf]
        %s709 = scalar_lea.vmem %s4, 1
        %v710 = vld [vmem:[%s709] sm:$0x1]
        %s711 = scalar_lea.vmem %s5, 64
        %v712 = vld [vmem:[%s711] sm:$0xf]
        %v713 = vld [vmem:[%s711 + $0x4] sm:$0xf]
        %v714 = vld [vmem:[%s711 + $0x8] sm:$0xf]
        %v715 = vld [vmem:[%s711 + $0xc] sm:$0xf]
        %v716 = vld [vmem:[%s711 + $0x10] sm:$0xf]
        %v717 = vld [vmem:[%s711 + $0x14] sm:$0xf]
        %v718 = vld [vmem:[%s711 + $0x18] sm:$0xf]
        %v719 = vld [vmem:[%s711 + $0x1c] sm:$0xf]
        %v720 = vld [vmem:[%s711 + $0x20] sm:$0xf]
        %v721 = vld [vmem:[%s711 + $0x24] sm:$0xf]
        %v722 = vld [vmem:[%s711 + $0x28] sm:$0xf]
        %v723 = vld [vmem:[%s711 + $0x2c] sm:$0xf]
        %v724 = vld [vmem:[%s711 + $0x30] sm:$0xf]
        %v725 = vld [vmem:[%s711 + $0x34] sm:$0xf]
        %v726 = vld [vmem:[%s711 + $0x38] sm:$0xf]
        %v727 = vld [vmem:[%s711 + $0x3c] sm:$0xf]
        %s728 = scalar_lea.vmem %s6, 1
        %v729 = vld [vmem:[%s728] sm:$0x1]
        %v730 = vpack.c.bf16 %v685, %v684
        %v731 = vpack.c.bf16 %v687, %v686
        %v732 = vpack.c.bf16 %v689, %v688
        %v733 = vpack.c.bf16 %v691, %v690
        %v735 = vperm.slane %v710, 0
        %v753 = vunpack.c.l.b16 %v693
        %v754 = vunpack.c.l.b16 %v694
        %v755 = vunpack.c.l.b16 %v695
        %v756 = vunpack.c.l.b16 %v696
        %v757 = vunpack.c.l.b16 %v697
        %v758 = vunpack.c.l.b16 %v698
        %v759 = vunpack.c.l.b16 %v699
        %v760 = vunpack.c.l.b16 %v700
        %v761 = vunpack.c.l.b16 %v701
        %v762 = vunpack.c.l.b16 %v702
        %v763 = vunpack.c.l.b16 %v703
        %v764 = vunpack.c.l.b16 %v704
        %v765 = vunpack.c.l.b16 %v705
        %v766 = vunpack.c.l.b16 %v706
        %v767 = vunpack.c.l.b16 %v707
        %v768 = vunpack.c.l.b16 %v708
        %v769 = vpack.c.b16 %v754, %v753
        %v770 = vpack.c.b16 %v756, %v755
        %v771 = vpack.c.b16 %v758, %v757
        %v772 = vpack.c.b16 %v760, %v759
        %v773 = vpack.c.b16 %v762, %v761
        %v774 = vpack.c.b16 %v764, %v763
        %v775 = vpack.c.b16 %v766, %v765
        %v776 = vpack.c.b16 %v768, %v767
        %785 = vmatpush.bf16.msra.mxu0 %v776
        %786 = vmatpush.bf16.msra.mxu0 %v775
        %787 = vmatpush.bf16.msra.mxu0 %v774
        %788 = vmatpush.bf16.msra.mxu0 %v773
        %789 = vmatpush.bf16.msra.mxu0 %v772
        %790 = vmatpush.bf16.msra.mxu0 %v771
        %791 = vmatpush.bf16.msra.mxu0 %v770
        %792 = vmatpush.bf16.msra.mxu0 %v769
        %793 = vmatmul.bf16.gmra.mxu0 %v730
        %v794 = vpop.f32.mrf.mxu0
        %v795 = vadd.f32 %v735, %v794
        %v796 = vpop.f32.mrf.mxu0
        %v797 = vadd.f32 %v735, %v796
        %798 = vmatmul.bf16.gmra.mxu0 %v731
        %v799 = vpop.f32.mrf.mxu0
        %v800 = vadd.f32 %v735, %v799
        %v801 = vpop.f32.mrf.mxu0
        %v802 = vadd.f32 %v735, %v801
        %803 = vmatmul.bf16.gmra.mxu0 %v732
        %v804 = vpop.f32.mrf.mxu0
        %v805 = vadd.f32 %v735, %v804
        %v806 = vpop.f32.mrf.mxu0
        %v807 = vadd.f32 %v735, %v806
        %808 = vmatmul.bf16.gmra.mxu0 %v733
        %v809 = vpop.f32.mrf.mxu0
        %v810 = vadd.f32 %v735, %v809
        %v811 = vpop.f32.mrf.mxu0
        %v812 = vadd.f32 %v735, %v811
        %813 = vdwg.mxu0
        %v814 = vmax.f32 %v795, 0.0
        %v815 = vmax.f32 %v797, 0.0
        %v816 = vmax.f32 %v800, 0.0
        %v817 = vmax.f32 %v802, 0.0
        %v818 = vmax.f32 %v805, 0.0
        %v819 = vmax.f32 %v807, 0.0
        %v820 = vmax.f32 %v810, 0.0
        %v821 = vmax.f32 %v812, 0.0
        %v822 = vpack.c.bf16 %v815, %v814
        %v823 = vpack.c.bf16 %v817, %v816
        %v824 = vpack.c.bf16 %v819, %v818
        %v825 = vpack.c.bf16 %v821, %v820
        %v827 = vperm.slane %v729, 0
        %v845 = vunpack.c.l.b16 %v712
        %v846 = vunpack.c.l.b16 %v713
        %v847 = vunpack.c.l.b16 %v714
        %v848 = vunpack.c.l.b16 %v715
        %v849 = vunpack.c.l.b16 %v716
        %v850 = vunpack.c.l.b16 %v717
        %v851 = vunpack.c.l.b16 %v718
        %v852 = vunpack.c.l.b16 %v719
        %v853 = vunpack.c.l.b16 %v720
        %v854 = vunpack.c.l.b16 %v721
        %v855 = vunpack.c.l.b16 %v722
        %v856 = vunpack.c.l.b16 %v723
        %v857 = vunpack.c.l.b16 %v724
        %v858 = vunpack.c.l.b16 %v725
        %v859 = vunpack.c.l.b16 %v726
        %v860 = vunpack.c.l.b16 %v727
        %v861 = vpack.c.b16 %v846, %v845
        %v862 = vpack.c.b16 %v848, %v847
        %v863 = vpack.c.b16 %v850, %v849
        %v864 = vpack.c.b16 %v852, %v851
        %v865 = vpack.c.b16 %v854, %v853
        %v866 = vpack.c.b16 %v856, %v855
        %v867 = vpack.c.b16 %v858, %v857
        %v868 = vpack.c.b16 %v860, %v859
        %877 = vmatpush.bf16.msra.mxu0 %v868
        %878 = vmatpush.bf16.msra.mxu0 %v867
        %879 = vmatpush.bf16.msra.mxu0 %v866
        %880 = vmatpush.bf16.msra.mxu0 %v865
        %881 = vmatpush.bf16.msra.mxu0 %v864
        %882 = vmatpush.bf16.msra.mxu0 %v863
        %883 = vmatpush.bf16.msra.mxu0 %v862
        %884 = vmatpush.bf16.msra.mxu0 %v861
        %885 = vmatmul.bf16.gmra.mxu0 %v822
        %v886 = vpop.f32.mrf.mxu0
        %v887 = vadd.f32 %v827, %v886
        %v888 = vpop.f32.mrf.mxu0
        %v889 = vadd.f32 %v827, %v888
        %890 = vmatmul.bf16.gmra.mxu0 %v823
        %v891 = vpop.f32.mrf.mxu0
        %v892 = vadd.f32 %v827, %v891
        %v893 = vpop.f32.mrf.mxu0
        %v894 = vadd.f32 %v827, %v893
        %895 = vmatmul.bf16.gmra.mxu0 %v824
        %v896 = vpop.f32.mrf.mxu0
        %v897 = vadd.f32 %v827, %v896
        %v898 = vpop.f32.mrf.mxu0
        %v899 = vadd.f32 %v827, %v898
        %900 = vmatmul.bf16.gmra.mxu0 %v825
        %v901 = vpop.f32.mrf.mxu0
        %v902 = vadd.f32 %v827, %v901
        %v903 = vpop.f32.mrf.mxu0
        %v904 = vadd.f32 %v827, %v903
        %905 = vdwg.mxu0
        %v906 = vadd.f32 %v684, %v887
        %v907 = vadd.f32 %v685, %v889
        %v908 = vadd.f32 %v686, %v892
        %v909 = vadd.f32 %v687, %v894
        %v910 = vadd.f32 %v688, %v897
        %v911 = vadd.f32 %v689, %v899
        %v912 = vadd.f32 %v690, %v902
        %v913 = vadd.f32 %v691, %v904
        %v914 = vld [vmem:[%s7] sm:$0x1]
        %v916 = vperm.slane %v914, 0
        %v918 = vmul.f32 %v906, %v916
        %v919 = vmul.f32 %v907, %v916
        %v920 = vmul.f32 %v908, %v916
        %v921 = vmul.f32 %v909, %v916
        %v922 = vmul.f32 %v910, %v916
        %v923 = vmul.f32 %v911, %v916
        %v924 = vmul.f32 %v912, %v916
        %v925 = vmul.f32 %v913, %v916
        %v926 = vld [vmem:[%s8] sm:$0x1]
        %v928 = vperm.slane %v926, 0
        %v930 = vadd.f32 %v918, %v928
        %v931 = vadd.f32 %v919, %v928
        %v932 = vadd.f32 %v920, %v928
        %v933 = vadd.f32 %v921, %v928
        %v934 = vadd.f32 %v922, %v928
        %v935 = vadd.f32 %v923, %v928
        %v936 = vadd.f32 %v924, %v928
        %v937 = vadd.f32 %v925, %v928
        %v938 = vmax.f32 %v930, 0.0
        %v939 = vmax.f32 %v931, 0.0
        %v940 = vmax.f32 %v932, 0.0
        %v941 = vmax.f32 %v933, 0.0
        %v942 = vmax.f32 %v934, 0.0
        %v943 = vmax.f32 %v935, 0.0
        %v944 = vmax.f32 %v936, 0.0
        %v945 = vmax.f32 %v937, 0.0
        %v946 = vpack.c.bf16 %v939, %v938
        %v947 = vpack.c.bf16 %v941, %v940
        %v948 = vpack.c.bf16 %v943, %v942
        %v949 = vpack.c.bf16 %v945, %v944
        %v950 = vld [vmem:[#allocation2] sm:$0xf]
        %v951 = vld [vmem:[#allocation2 + $0x4] sm:$0xf]
        %v952 = vld [vmem:[#allocation2 + $0x8] sm:$0xf]
        %v953 = vld [vmem:[#allocation2 + $0xc] sm:$0xf]
        %v954 = vld [vmem:[#allocation2 + $0x10] sm:$0xf]
        %v955 = vld [vmem:[#allocation2 + $0x14] sm:$0xf]
        %v956 = vld [vmem:[#allocation2 + $0x18] sm:$0xf]
        %v957 = vld [vmem:[#allocation2 + $0x1c] sm:$0xf]
        %v958 = vld [vmem:[#allocation2 + $0x20] sm:$0xf]
        %v959 = vld [vmem:[#allocation2 + $0x24] sm:$0xf]
        %v960 = vld [vmem:[#allocation2 + $0x28] sm:$0xf]
        %v961 = vld [vmem:[#allocation2 + $0x2c] sm:$0xf]
        %v962 = vld [vmem:[#allocation2 + $0x30] sm:$0xf]
        %v963 = vld [vmem:[#allocation2 + $0x34] sm:$0xf]
        %v964 = vld [vmem:[#allocation2 + $0x38] sm:$0xf]
        %v965 = vld [vmem:[#allocation2 + $0x3c] sm:$0xf]
        %v966 = vld [vmem:[%s10] sm:$0x1]
        %v968 = vperm.slane %v966, 0
        %v986 = vunpack.c.l.b16 %v950
        %v987 = vunpack.c.l.b16 %v951
        %v988 = vunpack.c.l.b16 %v952
        %v989 = vunpack.c.l.b16 %v953
        %v990 = vunpack.c.l.b16 %v954
        %v991 = vunpack.c.l.b16 %v955
        %v992 = vunpack.c.l.b16 %v956
        %v993 = vunpack.c.l.b16 %v957
        %v994 = vunpack.c.l.b16 %v958
        %v995 = vunpack.c.l.b16 %v959
        %v996 = vunpack.c.l.b16 %v960
        %v997 = vunpack.c.l.b16 %v961
        %v998 = vunpack.c.l.b16 %v962
        %v999 = vunpack.c.l.b16 %v963
        %v1000 = vunpack.c.l.b16 %v964
        %v1001 = vunpack.c.l.b16 %v965
        %v1002 = vpack.c.b16 %v987, %v986
        %v1003 = vpack.c.b16 %v989, %v988
        %v1004 = vpack.c.b16 %v991, %v990
        %v1005 = vpack.c.b16 %v993, %v992
        %v1006 = vpack.c.b16 %v995, %v994
        %v1007 = vpack.c.b16 %v997, %v996
        %v1008 = vpack.c.b16 %v999, %v998
        %v1009 = vpack.c.b16 %v1001, %v1000
        %1018 = vmatpush.bf16.msra.mxu0 %v1009
        %1019 = vmatpush.bf16.msra.mxu0 %v1008
        %1020 = vmatpush.bf16.msra.mxu0 %v1007
        %1021 = vmatpush.bf16.msra.mxu0 %v1006
        %1022 = vmatpush.bf16.msra.mxu0 %v1005
        %1023 = vmatpush.bf16.msra.mxu0 %v1004
        %1024 = vmatpush.bf16.msra.mxu0 %v1003
        %1025 = vmatpush.bf16.msra.mxu0 %v1002
        %1026 = vmatmul.bf16.gmra.mxu0 %v946
        %v1027 = vpop.f32.mrf.mxu0
        %v1028 = vadd.f32 %v968, %v1027
        %v1029 = vpop.f32.mrf.mxu0
        %v1030 = vadd.f32 %v968, %v1029
        %1031 = vmatmul.bf16.gmra.mxu0 %v947
        %v1032 = vpop.f32.mrf.mxu0
        %v1033 = vadd.f32 %v968, %v1032
        %v1034 = vpop.f32.mrf.mxu0
        %v1035 = vadd.f32 %v968, %v1034
        %1036 = vmatmul.bf16.gmra.mxu0 %v948
        %v1037 = vpop.f32.mrf.mxu0
        %v1038 = vadd.f32 %v968, %v1037
        %v1039 = vpop.f32.mrf.mxu0
        %v1040 = vadd.f32 %v968, %v1039
        %1041 = vmatmul.bf16.gmra.mxu0 %v949
        %v1042 = vpop.f32.mrf.mxu0
        %v1043 = vadd.f32 %v968, %v1042
        %v1044 = vpop.f32.mrf.mxu0
        %v1045 = vadd.f32 %v968, %v1044
        %1046 = vdwg.mxu0
        %v1047 = vpack.c.bf16 %v1028, %v1028
        %v1048 = vpack.c.bf16 %v1030, %v1030
        %v1049 = vpack.c.bf16 %v1033, %v1033
        %v1050 = vpack.c.bf16 %v1035, %v1035
        %v1051 = vpack.c.bf16 %v1038, %v1038
        %v1052 = vpack.c.bf16 %v1040, %v1040
        %v1053 = vpack.c.bf16 %v1043, %v1043
        %v1054 = vpack.c.bf16 %v1045, %v1045
        %1055 = vst [vmem:[%s405] sm:$0xf] %v1047
        %1056 = vst [vmem:[%s405 + $0x4] sm:$0xf] %v1048
        %1057 = vst [vmem:[%s405 + $0x8] sm:$0xf] %v1049
        %1058 = vst [vmem:[%s405 + $0xc] sm:$0xf] %v1050
        %1059 = vst [vmem:[%s405 + $0x10] sm:$0xf] %v1051
        %1060 = vst [vmem:[%s405 + $0x14] sm:$0xf] %v1052
        %1061 = vst [vmem:[%s405 + $0x18] sm:$0xf] %v1053
        %1062 = vst [vmem:[%s405 + $0x1c] sm:$0xf] %v1054
        %s1063 = smul.u32 8, %s23
        %p1064 = scmp.lt.s32.totalorder %s1063, 31
        %s1065 = scalar_select %p1064, %s1063, 31
        %s1066 = smul.addr %s1065, 4
        %s1067 = scalar_lea.vmem %s11, %s1066
        // Predicated region
        $region69: #{resnet_forward.1} parent=63 // pred_check
          %p1068 = pneg %p277
        $region70: #{resnet_forward.1} parent=63 // pred_check_branch
          %1070 = sbr.rel (%p1068) target = $region72
        $region71: #{resnet_forward.1} parent=63 // pred_region
          %s1071 = smul.u32 8, %s23
        $region72: #{resnet_forward.1} parent=63 // pred_fallthru
          _
      $region64: #{resnet_forward.1} parent=5 // pred_fallthru
        _
      %p1072 = scmp.le.s32.totalorder 2, %s18
      // Predicated region
      $region73: #{resnet_forward.1} parent=5 // pred_check
        %p1073 = pneg %p1072
      $region74: #{resnet_forward.1} parent=5 // pred_check_branch
        %1075 = sbr.rel (%p1073) target = $region76
      $region75: #{resnet_forward.1} parent=5 // pred_region
        %s1076 = ssub.s32 %s18, 2
        // Predicated region
        $region77: #{resnet_forward.1} parent=75 // pred_check
          %p1077 = pneg %p283
        $region78: #{resnet_forward.1} parent=75 // pred_check_branch
          %1079 = sbr.rel (%p1077) target = $region80
        $region79: #{resnet_forward.1} parent=75 // pred_region
          %s1080 = smul.u32 8, %s24
          %p1081 = scmp.lt.s32.totalorder %s1080, 31
          %s1082 = scalar_select %p1081, %s1080, 31
          %s1083 = smul.addr %s1082, 4
          %s1084 = scalar_lea.vmem %s11, %s1083
        $region80: #{resnet_forward.1} parent=75 // pred_fallthru
          _
      $region76: #{resnet_forward.1} parent=5 // pred_fallthru
        _
    $region6: #{resnet_forward.1} parent=1 // loop_footer
      %s22 = sadd.s32 1, %s18
    $region7: #{resnet_forward.1} parent=1 // loop_footer_branch
      %17 = sbr.rel target = $region3
    $region8: #{resnet_forward.1} parent=1 // loop_exit
      _
    %1085 = vsyncpa [#allocation3], 1
    %s1086 = scalar_lea.sflag [#allocation3], 1
    %1087 = vsyncpa %s1086, 1

</llo_original>
